<compile_context>
chip_gen: v7x
topology: tpu7x:2x2x1
jax: 0.10.0
libtpu: 0.0.40
codegen_flags: <defaults>
</compile_context>

<pallas_src>
import jax
import jax.numpy as jnp
from jax.experimental import pallas as pl
from jax.experimental.pallas import tpu as pltpu


# ~1M elements per streamed tile: 4 MiB in f32 / 2 MiB in bf16.
_TARGET_TILE_ELEMS = 1 << 20
# Generous but safe everywhere: < v7x's 64 MiB physical VMEM, well above the
# ~28-32 MiB worst case for double-buffered in/out + f32 intermediates.
_VMEM_LIMIT_BYTES = 48 * 1024 * 1024


def _fuse_kernel(seq_ref, exp_ref, mask_ref, out_ref):
    # seq_ref : (TB, 1, H), exp_ref : (TB, N, H), mask_ref : (TB, N, 1),
    # out_ref : (TB, N, H)
    e = exp_ref[...]                                   # native dtype, reused for the store
    s = seq_ref[...].astype(jnp.float32)               # (TB, 1, H), tiny f32
    m = mask_ref[...]                                   # (TB, N, 1)

    # scores[b, n] = <exp_rep[b, n, :], seq_rep[b, :]>  (VPU mul + lane reduce;
    # f32 accumulation only, no persistent f32 copy of the exp tile).
    scores = jnp.sum(e.astype(jnp.float32) * s, axis=-1, keepdims=True)  # (TB, N, 1)

    # masked_fill(mask == 0, -1e12)
    masked = jnp.where(m == 0, jnp.float32(-1e12), scores)               # (TB, N, 1)

    # Numerically stable softmax over N (sublane-axis reductions; layout of the
    # result already matches the broadcast against seq below).
    mmax = jnp.max(masked, axis=1, keepdims=True)                        # (TB, 1, 1)
    p = jnp.exp(masked - mmax)                                           # (TB, N, 1)
    denom = jnp.sum(p, axis=1, keepdims=True)                            # (TB, 1, 1)
    alpha = p / denom                                                    # exact divide

    # fuse = alpha * seq_rep + exp_rep   (exp added in its native dtype)
    out_ref[...] = (alpha * s).astype(out_ref.dtype) + e


def _pick_batch_tile(B, N, H):
    """Batch-tile size for the streamed exp/out blocks.

    Largest TB with TB*N*H <= ~1M elements (so double-buffered in+out plus f32
    intermediates stay inside the explicit VMEM limit). TB does not need to
    divide B (grid uses cdiv; the partial final block is masked on writeback).
    """
    elems_per_b = max(1, N * H)
    tb = max(1, min(B, _TARGET_TILE_ELEMS // elems_per_b))

    # Generation-aware adjustment: on multi-TensorCore chips (v7x) make the
    # number of grid steps a multiple of the core count so the "parallel"
    # batch axis shards evenly. Single-TC chips (v5e/v6e) keep the full tile.
    num_cores = 1
    try:
        info = pltpu.get_tpu_info()
        for attr in ("num_cores", "core_count", "num_tensorcores",
                     "tensorcore_count"):
            v = getattr(info, attr, None)
            if isinstance(v, int) and v > 1:
                num_cores = v
                break
    except Exception:
        num_cores = 1

    steps = pl.cdiv(B, tb)
    if num_cores > 1 and steps > 1 and steps % num_cores != 0:
        steps = ((steps + num_cores - 1) // num_cores) * num_cores
        tb = max(1, pl.cdiv(B, steps))
    return tb


def fuse_add_encoder_rep(seq_rep, exp_rep, mask):
    B, N, H = exp_rep.shape
    assert seq_rep.shape == (B, H)
    assert mask.shape == (B, N)

    # Free, contiguous wrapper-side reshapes so all BlockSpecs keep their last
    # two dims at full extent (valid for any TB, any H) and the kernel's
    # softmax state lives in the (N-on-sublane) layout with no relayout.
    seq3d = seq_rep[:, None, :]     # (B, 1, H)
    mask3d = mask[:, :, None]       # (B, N, 1)

    tb = _pick_batch_tile(B, N, H)
    grid = (pl.cdiv(B, tb),)

    itemsize = exp_rep.dtype.itemsize
    cost = pl.CostEstimate(
        flops=4 * B * N * H,                 # score mul/add + fuse mul/add
        transcendentals=B * N,               # softmax exp
        bytes_accessed=(2 * B * N * H * itemsize            # exp in + fuse out
                        + B * H * seq_rep.dtype.itemsize
                        + B * N * mask.dtype.itemsize),
    )

    return pl.pallas_call(
        _fuse_kernel,
        out_shape=jax.ShapeDtypeStruct((B, N, H), exp_rep.dtype),
        grid_spec=pltpu.PrefetchScalarGridSpec(
            num_scalar_prefetch=0,
            grid=grid,
            in_specs=[
                pl.BlockSpec((tb, 1, H), lambda b: (b, 0, 0)),
                pl.BlockSpec((tb, N, H), lambda b: (b, 0, 0)),
                pl.BlockSpec((tb, N, 1), lambda b: (b, 0, 0)),
            ],
            out_specs=pl.BlockSpec((tb, N, H), lambda b: (b, 0, 0)),
        ),
        compiler_params=pltpu.CompilerParams(
            dimension_semantics=("parallel",),
            vmem_limit_bytes=_VMEM_LIMIT_BYTES,
        ),
        cost_estimate=cost,
    )(seq3d, exp_rep, mask3d)


def reference(seq_rep, exp_rep, mask):
    # pure-JAX reference of the PyTorch forward
    scores = jnp.einsum("bnh,bh->bn", exp_rep, seq_rep)
    scores = jnp.where(mask == 0, -1e12, scores)
    alpha = jax.nn.softmax(scores, axis=-1)
    return alpha[..., None] * seq_rep[:, None, :] + exp_rep


if __name__ == "__main__":
    B, N, H = 2, 8, 32
    key = jax.random.PRNGKey(0)
    k1, k2, k3 = jax.random.split(key, 3)

    seq_rep = jax.random.normal(k1, (B, H), jnp.float32)
    exp_rep = jax.random.normal(k2, (B, N, H), jnp.float32)
    mask = (jax.random.uniform(k3, (B, N)) > 0.3).astype(jnp.float32)
    # make sure at least one position per row is unmasked
    mask = mask.at[:, 0].set(1.0)

    out = jax.block_until_ready(fuse_add_encoder_rep(seq_rep, exp_rep, mask))
    ref = reference(seq_rep, exp_rep, mask)
    assert out.shape == (B, N, H)
    # Exact softmax divide => tight tolerance.
    assert jnp.allclose(out, ref, atol=1e-5, rtol=1e-5), (
        f"max abs err {jnp.max(jnp.abs(out - ref))}")

    # Fully-masked-row check: alpha degrades to uniform 1/N, matching the
    # PyTorch masked_fill(-1e12) + softmax reference.
    mask_full = mask.at[1, :].set(0.0)
    out2 = jax.block_until_ready(fuse_add_encoder_rep(seq_rep, exp_rep, mask_full))
    ref2 = reference(seq_rep, exp_rep, mask_full)
    assert jnp.allclose(out2, ref2, atol=1e-5, rtol=1e-5), (
        f"max abs err (masked row) {jnp.max(jnp.abs(out2 - ref2))}")

    print("KERNEL_OK")
</pallas_src>

<mosaic_0001>
module attributes {stable_mosaic.version = 11 : i64} {
  func.func @_fuse_kernel(%arg0: i32, %arg1: memref<2x1x32xf32, #tpu.memory_space<vmem>>, %arg2: memref<2x8x32xf32, #tpu.memory_space<vmem>>, %arg3: memref<2x8x1xf32, #tpu.memory_space<vmem>>, %arg4: memref<2x8x32xf32, #tpu.memory_space<vmem>>) attributes {dimension_semantics = [#tpu.dimension_semantics<parallel>], iteration_bounds = array<i64: 1>, scalar_prefetch = 0 : i64, scratch_operands = 0 : i64, tpu.core_type = #tpu.core_type<tc>, window_params = [{transform_indices = @transform_0, window_bounds = array<i64: 2, 1, 32>}, {transform_indices = @transform_1, window_bounds = array<i64: 2, 8, 32>}, {transform_indices = @transform_2, window_bounds = array<i64: 2, 8, 1>}, {transform_indices = @transform_3, window_bounds = array<i64: 2, 8, 32>}]} {
    %c0 = arith.constant 0 : index
    %c0_0 = arith.constant 0 : index
    %c0_1 = arith.constant 0 : index
    %0 = vector.load %arg2[%c0, %c0_0, %c0_1] : memref<2x8x32xf32, #tpu.memory_space<vmem>>, vector<2x8x32xf32>
    %c0_2 = arith.constant 0 : index
    %c0_3 = arith.constant 0 : index
    %c0_4 = arith.constant 0 : index
    %1 = vector.load %arg1[%c0_2, %c0_3, %c0_4] : memref<2x1x32xf32, #tpu.memory_space<vmem>>, vector<2x1x32xf32>
    %c0_5 = arith.constant 0 : index
    %c0_6 = arith.constant 0 : index
    %c0_7 = arith.constant 0 : index
    %2 = vector.load %arg3[%c0_5, %c0_6, %c0_7] : memref<2x8x1xf32, #tpu.memory_space<vmem>>, vector<2x8x1xf32>
    %3 = vector.broadcast %1 : vector<2x1x32xf32> to vector<2x8x32xf32>
    %4 = arith.mulf %0, %3 : vector<2x8x32xf32>
    %cst = arith.constant dense<0.000000e+00> : vector<2x8xf32>
    %5 = vector.multi_reduction <add>, %4, %cst [2] : vector<2x8x32xf32> to vector<2x8xf32>
    %6 = vector.shape_cast %5 : vector<2x8xf32> to vector<2x8x1xf32>
    %cst_8 = arith.constant 0.000000e+00 : f32
    %7 = vector.broadcast %cst_8 : f32 to vector<2x8x1xf32>
    %8 = arith.cmpf oeq, %2, %7 : vector<2x8x1xf32>
    %cst_9 = arith.constant -9.99999995E+11 : f32
    %9 = vector.broadcast %cst_9 : f32 to vector<2x8x1xf32>
    %10 = arith.select %8, %9, %6 : vector<2x8x1xi1>, vector<2x8x1xf32>
    %cst_10 = arith.constant dense<0xFF800000> : vector<2x1xf32>
    %11 = vector.multi_reduction <maximumf>, %10, %cst_10 [1] : vector<2x8x1xf32> to vector<2x1xf32>
    %12 = vector.shape_cast %11 : vector<2x1xf32> to vector<2x1x1xf32>
    %13 = vector.broadcast %12 : vector<2x1x1xf32> to vector<2x8x1xf32>
    %14 = arith.subf %10, %13 : vector<2x8x1xf32>
    %15 = math.exp %14 : vector<2x8x1xf32>
    %cst_11 = arith.constant dense<0.000000e+00> : vector<2x1xf32>
    %16 = vector.multi_reduction <add>, %15, %cst_11 [1] : vector<2x8x1xf32> to vector<2x1xf32>
    %17 = vector.shape_cast %16 : vector<2x1xf32> to vector<2x1x1xf32>
    %18 = vector.broadcast %17 : vector<2x1x1xf32> to vector<2x8x1xf32>
    %19 = arith.divf %15, %18 : vector<2x8x1xf32>
    %20 = vector.broadcast %19 : vector<2x8x1xf32> to vector<2x8x32xf32>
    %21 = vector.broadcast %1 : vector<2x1x32xf32> to vector<2x8x32xf32>
    %22 = arith.mulf %20, %21 : vector<2x8x32xf32>
    %23 = arith.addf %22, %0 : vector<2x8x32xf32>
    %c0_12 = arith.constant 0 : index
    %c0_13 = arith.constant 0 : index
    %c0_14 = arith.constant 0 : index
    %24 = vector.load %arg4[%c0_12, %c0_13, %c0_14] : memref<2x8x32xf32, #tpu.memory_space<vmem>>, vector<2x8x32xf32>
    tpu.vector_store %arg4[%c0_12, %c0_13, %c0_14], %23 {strides = array<i32>} : memref<2x8x32xf32, #tpu.memory_space<vmem>>, vector<2x8x32xf32>,
    return
  }
  func.func @transform_0(%arg0: i32) -> (i32, i32, i32) {
    %c0_i32 = arith.constant 0 : i32
    %c0_i32_0 = arith.constant 0 : i32
    %c0_i32_1 = arith.constant 0 : i32
    return %arg0, %c0_i32, %c0_i32_0 : i32, i32, i32
  }
  func.func @transform_1(%arg0: i32) -> (i32, i32, i32) {
    %c0_i32 = arith.constant 0 : i32
    %c0_i32_0 = arith.constant 0 : i32
    %c0_i32_1 = arith.constant 0 : i32
    return %arg0, %c0_i32, %c0_i32_0 : i32, i32, i32
  }
  func.func @transform_2(%arg0: i32) -> (i32, i32, i32) {
    %c0_i32 = arith.constant 0 : i32
    %c0_i32_0 = arith.constant 0 : i32
    %c0_i32_1 = arith.constant 0 : i32
    return %arg0, %c0_i32, %c0_i32_0 : i32, i32, i32
  }
  func.func @transform_3(%arg0: i32) -> (i32, i32, i32) {
    %c0_i32 = arith.constant 0 : i32
    %c0_i32_0 = arith.constant 0 : i32
    %c0_i32_1 = arith.constant 0 : i32
    return %arg0, %c0_i32, %c0_i32_0 : i32, i32, i32
  }
}

</mosaic_0001>

<llo_original>
// kernel: tpu_custom_call.1
$region0: #{tpu_custom_call.1}
  #allocation0 [shape = 'u32[]', space=smem, size = 0x4, offset = 0x4, fixed_abs, tag = 'smem constant byte address 0x4 - core index']
  #allocation1 [shape = 'u32[144,128]{1,0:T(1,128)}', space=vmem, size = 0x12000, scoped, tag = 'internal scratch']
  %s0 = inlined_call_operand.vmem [shape: f32[2,1,32], index: 0, kind: input, shape index: {}]
  %s1 = inlined_call_operand.vmem [shape: f32[2,8,32], index: 1, kind: input, shape index: {}]
  %s2 = inlined_call_operand.vmem [shape: f32[2,8,1], index: 2, kind: input, shape index: {}]
  %s3 = inlined_call_operand.hbm [shape: f32[2,8,32], index: 3, kind: output, shape index: {}]
  %s4 = sld [smem:[#allocation0]]
  $region22: #{tpu_custom_call.1} parent=0
    _
  %s6 = ssub.s32 1, %s4
  %s7 = scalar_select 0, %s6, %s4
  $region1: #{tpu_custom_call.1} parent=0
    #allocation2 [shape = 'u8[8192]{0}', space=vmem, size = 0x2000, scoped, tag = 'output window, operand 0, single buffered']
    #allocation3 [shape = 's32[1]{0}', space=sflag, size = 0x4, scoped, tag = 'scoped memory for tpu_custom_call.1']
    %8 = vsyncpa [#allocation3], 0
    // Predicated region
    $region2: #{tpu_custom_call.1} parent=1 // pred_check
      _
    $region3: #{tpu_custom_call.1} parent=1 // pred_check_branch
      %10 = sbr.rel (0) target = $region5
    $region4: #{tpu_custom_call.1} parent=1 // pred_region
      _
    $region5: #{tpu_custom_call.1} parent=1 // pred_fallthru
      _
    // Predicated region
    $region6: #{tpu_custom_call.1} parent=1 // pred_check
      _
    $region7: #{tpu_custom_call.1} parent=1 // pred_check_branch
      %12 = sbr.rel (0) target = $region9
    $region8: #{tpu_custom_call.1} parent=1 // pred_region
      _
    $region9: #{tpu_custom_call.1} parent=1 // pred_fallthru
      _
    // Predicated region
    $region10: #{tpu_custom_call.1} parent=1 // pred_check
      _
    $region11: #{tpu_custom_call.1} parent=1 // pred_check_branch
      %14 = sbr.rel (0) target = $region13
    $region12: #{tpu_custom_call.1} parent=1 // pred_region
      _
    $region13: #{tpu_custom_call.1} parent=1 // pred_fallthru
      _
    %v15 = vld [vmem:[%s1] sm:$0xff]
    %v16 = vld [vmem:[%s1 + $0x8] sm:$0xff]
    %v17 = vld [vmem:[%s0] sm:$0x1]
    %v18 = vld [vmem:[%s0 + $0x1] sm:$0x1]
    %v19 = vld [vmem:[%s2] sm:$0xff]
    %v20 = vld [vmem:[%s2 + $0x8] sm:$0xff]
    %v23 = vlaneseq
    %v24 = vshrl.u32 %v23, 7
    %v25 = vsub.s32 0, %v24
    %v26 = vrot.slane %v17, %v25
    %v27 = vlaneseq
    %v28 = vshrl.u32 %v27, 7
    %v29 = vsub.s32 0, %v28
    %v30 = vrot.slane %v18, %v29
    %v33 = vmul.f32 %v15, %v26
    %v34 = vmul.f32 %v16, %v30
    %vm35 = vcmask 261120
    %v36 = vsel %vm35, %v33, 0.0
    %37 = vadd.xlane.f32.xlu0 %v36
    %v38 = vpop.xlane.xlu0 %37
    %v39 = vsel %vm35, %v34, 0.0
    %40 = vadd.xlane.f32.xlu0 %v39
    %v41 = vpop.xlane.xlu0 %40
    %vm42 = vcmp.eq.f32.partialorder %v19, 0.0
    %vm43 = vcmp.eq.f32.partialorder %v20, 0.0
    %v44 = vsel %vm42, -1e+12, %v38
    %v45 = vsel %vm43, -1e+12, %v41
    %vm46 = vcmask 7168
    %v47 = vsel %vm46, %v44, -inf
    %v48 = vrot.slane %v47, 4
    %v49 = vmax.f32 %v47, %v48
    %v50 = vrot.slane %v49, 2
    %v51 = vmax.f32 %v49, %v50
    %v52 = vrot.slane %v51, 1
    %v53 = vmax.f32 %v51, %v52
    %v54 = vsel %vm46, %v45, -inf
    %v55 = vrot.slane %v54, 4
    %v56 = vmax.f32 %v54, %v55
    %v57 = vrot.slane %v56, 2
    %v58 = vmax.f32 %v56, %v57
    %v59 = vrot.slane %v58, 1
    %v60 = vmax.f32 %v58, %v59
    %v61 = vsub.f32 %v44, %v53
    %v62 = vsub.f32 %v45, %v60
    %v63 = vmul.f32 %v61, 1.442695
    %v64 = vpow.pop %v63
    %v65 = vmul.f32 %v62, 1.442695
    %v66 = vpow.pop %v65
    %v67 = vsel %vm46, %v64, 0.0
    %v68 = vrot.slane %v67, 4
    %v69 = vadd.f32 %v67, %v68
    %v70 = vrot.slane %v69, 2
    %v71 = vadd.f32 %v69, %v70
    %v72 = vrot.slane %v71, 1
    %v73 = vadd.f32 %v71, %v72
    %v74 = vsel %vm46, %v66, 0.0
    %v75 = vrot.slane %v74, 4
    %v76 = vadd.f32 %v74, %v75
    %v77 = vrot.slane %v76, 2
    %v78 = vadd.f32 %v76, %v77
    %v79 = vrot.slane %v78, 1
    %v80 = vadd.f32 %v78, %v79
    %v81 = vrcp.pop %v73
    %v82 = vmul.f32 %v64, %v81
    %v83 = vrcp.pop %v80
    %v84 = vmul.f32 %v66, %v83
    %86 = vset.pattern.permute.xlu0 0
    %87 = vperm.xlu0 %86, %v82
    %v88 = vpop.permute.xlu0 %87
    %91 = vset.pattern.permute.xlu0 0
    %92 = vperm.xlu0 %91, %v84
    %v93 = vpop.permute.xlu0 %92
    %v95 = vmul.f32 %v88, %v26
    %v96 = vmul.f32 %v93, %v30
    %v97 = vadd.f32 %v95, %v15
    %v98 = vadd.f32 %v96, %v16
    %99 = vst.msk [vmem:[#allocation2] sm:$0xff] %vm35, %v97
    %100 = vst.msk [vmem:[#allocation2 + $0x8] sm:$0xff] %vm35, %v98
    // Predicated region
    $region14: #{tpu_custom_call.1} parent=1 // pred_check
      _
    $region15: #{tpu_custom_call.1} parent=1 // pred_check_branch
      %102 = sbr.rel (0) target = $region17
    $region16: #{tpu_custom_call.1} parent=1 // pred_region
      %s104 = ssub.s32 256, 256
      %105 = vsyncadd [#allocation3], %s104
      %s106 = sshll.u32 [#allocation2], 4
      %s107 = int_to_ptr.vmem [resolvable:$true] %s106
      %112 = dma.vmem_to_hbm [thread:$0]  %s107, 256, %s3, [#allocation3], 128, 128, 8
    $region17: #{tpu_custom_call.1} parent=1 // pred_fallthru
      _
    // Predicated region
    $region18: #{tpu_custom_call.1} parent=1 // pred_check
      _
    $region19: #{tpu_custom_call.1} parent=1 // pred_check_branch
      %114 = sbr.rel (0) target = $region21
    $region20: #{tpu_custom_call.1} parent=1 // pred_region
      %115 = dma.done [#allocation3], 256
    $region21: #{tpu_custom_call.1} parent=1 // pred_fallthru
      _
    %116 = vsyncpa [#allocation3], 1

</llo_original>
